<compile_context>
chip_gen: v7x
topology: tpu7x:2x2x1
jax: 0.10.0
libtpu: 0.0.40
codegen_flags: <defaults>
</compile_context>

<pallas_src>
import functools

import jax
import jax.numpy as jnp
from jax.experimental import pallas as pl
from jax.experimental.pallas import tpu as pltpu


def _round_up(n, m):
    return ((n + m - 1) // m) * m


def _cdiv(n, m):
    return (n + m - 1) // m


def churn_kernel(x_ref, w1_ref, b1_ref, w2_ref, b2_ref, out_ref, *, sub, n_sub):
    # Resident params (constant index maps) -> loaded once per grid step.
    w1 = w1_ref[...]            # (H, F) bf16
    b1 = b1_ref[...]            # (H, 1) f32
    w2 = w2_ref[...]            # (H, 1) f32
    b2 = b2_ref[0]              # scalar f32 (SMEM)

    def body(j, carry):
        off = pl.multiple_of(j * sub, 128)
        # (sub, F) f32 slice of the streamed batch tile; cast to bf16 on-chip.
        xb = x_ref[pl.ds(off, sub), :].astype(jnp.bfloat16)
        # fc1 on the MXU: contract F of w1 (H, F) with F of x (sub, F) -> (H, sub),
        # bf16 inputs with f32 accumulation.  Batch sits on the lane axis.
        h = jax.lax.dot_general(
            w1, xb, dimension_numbers=(((1,), (1,)), ((), ())),
            preferred_element_type=jnp.float32)
        h = jnp.maximum(h + b1, 0.0)                        # bias + ReLU (VPU, f32)
        # fc2 (single output unit): VPU multiply + cross-sublane (XLU) reduction.
        z = jnp.sum(h * w2, axis=0, keepdims=True) + b2     # (1, sub) logits
        # sigmoid(z) = 0.5*tanh(z/2) + 0.5 : single EUP op, exact & overflow-free.
        out_ref[:, pl.ds(off, sub)] = (0.5 * jnp.tanh(0.5 * z) + 0.5).astype(out_ref.dtype)
        return carry

    jax.lax.fori_loop(0, n_sub, body, 0)


@functools.partial(jax.jit, static_argnames=("block_batch", "sub_batch"))
def churn_forward(x, w1, b1, w2, b2, *, block_batch=32768, sub_batch=2048):
    """x: (B, F) f32.  Params in PyTorch nn.Linear layout:
       w1: (H, F), b1: (H,), w2: (1, H), b2: (1,).  Returns (B, 1) f32 probabilities."""
    B, F = x.shape
    H = w1.shape[0]

    # --- batch-tile selection --------------------------------------------------
    # One (TB, F) f32 x buffer costs TB * round_up(F, 128) * 4 bytes of VMEM (the
    # minor dim is lane-padded).  Keep the double-buffered pair within ~16 MiB so
    # the kernel fits every generation's scoped VMEM (incl. v7x: 64 MiB physical,
    # 32 MiB scoped default).
    lane_f = _round_up(F, 128)
    x_vmem_budget = 16 * 1024 * 1024
    tb_vmem_cap = max(128, (x_vmem_budget // (2 * lane_f * 4)) // 128 * 128)
    tb_max = max(128, min(block_batch, tb_vmem_cap))

    # Target >= 2 balanced grid steps (feeds both v7x TensorCores via the
    # "parallel" axis) while keeping per-step DMA large (~1 MiB at F=16).
    g_target = max(2, _cdiv(B, tb_max))
    TB = max(128, min(_round_up(_cdiv(B, g_target), 128), tb_max))
    SUB = min(sub_batch, TB)          # in-kernel sub-tile: bounds the f32 (H, SUB) temp
    TB = _round_up(TB, SUB)           # inner loop sees a whole number of sub-tiles
    G = _cdiv(B, TB)                  # tail block (if any) is masked by Pallas
    n_sub = TB // SUB

    w1_bf = w1.astype(jnp.bfloat16)                  # (H, F) MXU operand (tiny)
    b1_col = b1.reshape(H, 1).astype(jnp.float32)    # (H, 1)
    w2_col = w2.reshape(H, 1).astype(jnp.float32)    # (H, 1)
    b2_s = b2.reshape(1).astype(jnp.float32)         # scalar via SMEM

    kernel = functools.partial(churn_kernel, sub=SUB, n_sub=n_sub)

    out = pl.pallas_call(
        kernel,
        out_shape=jax.ShapeDtypeStruct((1, B), jnp.float32),
        grid_spec=pltpu.PrefetchScalarGridSpec(
            num_scalar_prefetch=0,
            grid=(G,),
            in_specs=[
                pl.BlockSpec((TB, F), lambda i: (i, 0)),   # x: streamed f32 batch tiles
                pl.BlockSpec((H, F), lambda i: (0, 0)),    # w1: resident across steps
                pl.BlockSpec((H, 1), lambda i: (0, 0)),    # b1: resident
                pl.BlockSpec((H, 1), lambda i: (0, 0)),    # w2: resident
                pl.BlockSpec(memory_space=pltpu.MemorySpace.SMEM),  # b2 scalar
            ],
            out_specs=pl.BlockSpec((1, TB), lambda i: (0, i)),      # lane-dense output
        ),
        compiler_params=pltpu.CompilerParams(
            dimension_semantics=("parallel",),        # independent batch tiles (v7x megacore)
            vmem_limit_bytes=32 * 1024 * 1024,        # explicit, safe on v5e/v6e/v7x
        ),
    )(x, w1_bf, b1_col, w2_col, b2_s)

    return out.reshape(B, 1)


def init_params(key, input_size, hidden=64):
    # Deterministic synthetic init mirroring PyTorch nn.Linear shapes:
    #   fc1.weight: (64, input_size), fc1.bias: (64,)
    #   fc2.weight: (1, 64),          fc2.bias: (1,)
    k1, k2, k3, k4 = jax.random.split(key, 4)
    bound1 = 1.0 / (input_size ** 0.5)
    bound2 = 1.0 / (hidden ** 0.5)
    w1 = jax.random.uniform(k1, (hidden, input_size), jnp.float32, -bound1, bound1)
    b1 = jax.random.uniform(k2, (hidden,), jnp.float32, -bound1, bound1)
    w2 = jax.random.uniform(k3, (1, hidden), jnp.float32, -bound2, bound2)
    b2 = jax.random.uniform(k4, (1,), jnp.float32, -bound2, bound2)
    return w1, b1, w2, b2


def _reference(x, w1, b1, w2, b2):
    # Pure-JAX reference matching the kernel numerics (bf16-rounded x / w1, f32 acc).
    xb = x.astype(jnp.bfloat16).astype(jnp.float32)
    w1b = w1.astype(jnp.bfloat16).astype(jnp.float32)
    h = jnp.maximum(xb @ w1b.T + b1[None, :], 0.0)
    return jax.nn.sigmoid(h @ w2.reshape(-1, 1) + b2.reshape(1, 1))


if __name__ == "__main__":
    key = jax.random.PRNGKey(0)
    k_x, k_x2, k_p = jax.random.split(key, 3)

    input_size = 16   # stands in for X.shape[1] of the CSV features
    hidden = 64
    w1, b1, w2, b2 = init_params(k_p, input_size, hidden)

    # Small case (single grid step, single sub-tile).
    x = jax.random.normal(k_x, (8, input_size), dtype=jnp.float32)
    out = jax.block_until_ready(churn_forward(x, w1, b1, w2, b2))
    assert out.shape == (8, 1)
    assert jnp.allclose(out, _reference(x, w1, b1, w2, b2), atol=2e-3)

    # Non-divisible batch: 2 grid steps + Pallas-masked tail block.
    x2 = jax.random.normal(k_x2, (300, input_size), dtype=jnp.float32)
    out2 = jax.block_until_ready(churn_forward(x2, w1, b1, w2, b2))
    assert out2.shape == (300, 1)
    assert jnp.allclose(out2, _reference(x2, w1, b1, w2, b2), atol=2e-3)

    print("KERNEL_OK")
</pallas_src>

<mosaic_0001>
module attributes {stable_mosaic.version = 11 : i64} {
  func.func @churn_kernel(%arg0: i32, %arg1: memref<128x16xf32, #tpu.memory_space<vmem>>, %arg2: memref<64x16xbf16, #tpu.memory_space<vmem>>, %arg3: memref<64x1xf32, #tpu.memory_space<vmem>>, %arg4: memref<64x1xf32, #tpu.memory_space<vmem>>, %arg5: memref<1xf32, #tpu.memory_space<smem>>, %arg6: memref<1x128xf32, #tpu.memory_space<vmem>>) attributes {dimension_semantics = [#tpu.dimension_semantics<parallel>], iteration_bounds = array<i64: 1>, scalar_prefetch = 0 : i64, scratch_operands = 0 : i64, tpu.core_type = #tpu.core_type<tc>, window_params = [{transform_indices = @transform_0, window_bounds = array<i64: 128, 16>}, {pipeline_mode = #tpu.pipeline_mode<synchronous>, transform_indices = @transform_1, window_bounds = array<i64: 64, 16>}, {pipeline_mode = #tpu.pipeline_mode<synchronous>, transform_indices = @transform_2, window_bounds = array<i64: 64, 1>}, {pipeline_mode = #tpu.pipeline_mode<synchronous>, transform_indices = @transform_3, window_bounds = array<i64: 64, 1>}, {transform_indices = @transform_4, window_bounds = array<i64: 1>}, {transform_indices = @transform_5, window_bounds = array<i64: 1, 128>}]} {
    %c0 = arith.constant 0 : index
    %c0_0 = arith.constant 0 : index
    %0 = vector.load %arg2[%c0, %c0_0] : memref<64x16xbf16, #tpu.memory_space<vmem>>, vector<64x16xbf16>
    %c0_1 = arith.constant 0 : index
    %c0_2 = arith.constant 0 : index
    %1 = vector.load %arg3[%c0_1, %c0_2] : memref<64x1xf32, #tpu.memory_space<vmem>>, vector<64x1xf32>
    %c0_3 = arith.constant 0 : index
    %c0_4 = arith.constant 0 : index
    %2 = vector.load %arg4[%c0_3, %c0_4] : memref<64x1xf32, #tpu.memory_space<vmem>>, vector<64x1xf32>
    %c0_5 = arith.constant 0 : index
    %3 = memref.load %arg5[%c0_5] : memref<1xf32, #tpu.memory_space<smem>>
    %c0_i32 = arith.constant 0 : i32
    %c128_i32 = arith.constant 128 : i32
    %4 = arith.muli %c0_i32, %c128_i32 : i32
    %5 = tpu.assume_multiple %4, 128 : i32
    %6 = arith.index_cast %5 : i32 to index
    %c0_6 = arith.constant 0 : index
    %7 = vector.load %arg1[%6, %c0_6] : memref<128x16xf32, #tpu.memory_space<vmem>>, vector<128x16xf32>
    %8 = arith.truncf %7 : vector<128x16xf32> to vector<128x16xbf16>
    %cst = arith.constant dense<0.000000e+00> : vector<64x128xf32>
    %9 = tpu.matmul %0, %8, %cst {dimension_numbers = #tpu.dot_dimension_numbers<[1], [1], [0], [0], [0, 0, 1, 0], [], []>} : vector<64x16xbf16>, vector<128x16xbf16>, vector<64x128xf32> -> vector<64x128xf32>
    %10 = vector.broadcast %1 : vector<64x1xf32> to vector<64x128xf32>
    %11 = arith.addf %9, %10 : vector<64x128xf32>
    %cst_7 = arith.constant 0.000000e+00 : f32
    %12 = vector.broadcast %cst_7 : f32 to vector<64x128xf32>
    %13 = arith.maximumf %11, %12 : vector<64x128xf32>
    %14 = vector.broadcast %2 : vector<64x1xf32> to vector<64x128xf32>
    %15 = arith.mulf %13, %14 : vector<64x128xf32>
    %cst_8 = arith.constant dense<0.000000e+00> : vector<128xf32>
    %16 = vector.multi_reduction <add>, %15, %cst_8 [0] : vector<64x128xf32> to vector<128xf32>
    %17 = vector.shape_cast %16 : vector<128xf32> to vector<1x128xf32>
    %18 = vector.broadcast %3 : f32 to vector<1x128xf32>
    %19 = arith.addf %17, %18 : vector<1x128xf32>
    %cst_9 = arith.constant 5.000000e-01 : f32
    %20 = vector.broadcast %cst_9 : f32 to vector<1x128xf32>
    %21 = arith.mulf %20, %19 : vector<1x128xf32>
    %22 = math.tanh %21 : vector<1x128xf32>
    %cst_10 = arith.constant 5.000000e-01 : f32
    %23 = vector.broadcast %cst_10 : f32 to vector<1x128xf32>
    %24 = arith.mulf %23, %22 : vector<1x128xf32>
    %cst_11 = arith.constant 5.000000e-01 : f32
    %25 = vector.broadcast %cst_11 : f32 to vector<1x128xf32>
    %26 = arith.addf %24, %25 : vector<1x128xf32>
    %c0_12 = arith.constant 0 : index
    %27 = arith.index_cast %5 : i32 to index
    %28 = vector.load %arg6[%c0_12, %27] : memref<1x128xf32, #tpu.memory_space<vmem>>, vector<1x128xf32>
    tpu.vector_store %arg6[%c0_12, %27], %26 {strides = array<i32>} : memref<1x128xf32, #tpu.memory_space<vmem>>, vector<1x128xf32>,
    %c1_i32 = arith.constant 1 : i32
    return
  }
  func.func @transform_0(%arg0: i32) -> (i32, i32) {
    %c0_i32 = arith.constant 0 : i32
    %c0_i32_0 = arith.constant 0 : i32
    return %arg0, %c0_i32 : i32, i32
  }
  func.func @transform_1(%arg0: i32) -> (i32, i32) {
    %c0_i32 = arith.constant 0 : i32
    %c0_i32_0 = arith.constant 0 : i32
    %c0_i32_1 = arith.constant 0 : i32
    return %c0_i32, %c0_i32_0 : i32, i32
  }
  func.func @transform_2(%arg0: i32) -> (i32, i32) {
    %c0_i32 = arith.constant 0 : i32
    %c0_i32_0 = arith.constant 0 : i32
    %c0_i32_1 = arith.constant 0 : i32
    return %c0_i32, %c0_i32_0 : i32, i32
  }
  func.func @transform_3(%arg0: i32) -> (i32, i32) {
    %c0_i32 = arith.constant 0 : i32
    %c0_i32_0 = arith.constant 0 : i32
    %c0_i32_1 = arith.constant 0 : i32
    return %c0_i32, %c0_i32_0 : i32, i32
  }
  func.func @transform_4(%arg0: i32) -> i32 {
    %c0_i32 = arith.constant 0 : i32
    %c0_i32_0 = arith.constant 0 : i32
    return %c0_i32 : i32
  }
  func.func @transform_5(%arg0: i32) -> (i32, i32) {
    %c0_i32 = arith.constant 0 : i32
    %c0_i32_0 = arith.constant 0 : i32
    return %c0_i32, %arg0 : i32, i32
  }
}

</mosaic_0001>

<llo_original>
// kernel: churn_forward.1
$region0: #{churn_forward.1}
  #allocation0 [shape = 'u32[]', space=smem, size = 0x4, offset = 0x4, fixed_abs, tag = 'smem constant byte address 0x4 - core index']
  #allocation1 [shape = 'u32[144,128]{1,0:T(1,128)}', space=vmem, size = 0x12000, scoped, tag = 'internal scratch']
  #allocation2 [shape = 'f32[1]{0:T(128)S(6)}', space=smem, size = 0x200, scoped, tag = 'scoped memory for churn_forward.1']
  %s0 = inlined_call_operand.vmem [shape: f32[8,16], index: 0, kind: input, shape index: {}]
  %s1 = inlined_call_operand.vmem [shape: bf16[64,16], index: 1, kind: input, shape index: {}]
  %s2 = inlined_call_operand.vmem [shape: f32[64,1], index: 2, kind: input, shape index: {}]
  %s3 = inlined_call_operand.vmem [shape: f32[64,1], index: 3, kind: input, shape index: {}]
  %s4 = inlined_call_operand.<no memory space> [shape: f32[1], index: 4, kind: input, shape index: {}]
  %s5 = inlined_call_operand.hbm [shape: f32[1,8], index: 5, kind: output, shape index: {}]
  %s6 = sld [smem:[#allocation0]]
  $region30: #{churn_forward.1} parent=0
    _
  %s8 = ssub.s32 1, %s6
  %s9 = scalar_select 0, %s8, %s6
  %10 = sst [smem:[#allocation2]] %s4
  $region1: #{churn_forward.1} parent=0
    #allocation3 [shape = 'u8[512]{0}', space=vmem, size = 0x400, scoped, tag = 'output window, operand 0, single buffered']
    #allocation4 [shape = 's32[1]{0}', space=sflag, size = 0x4, scoped, tag = 'scoped memory for churn_forward.1']
    %11 = vsyncpa [#allocation4], 0
    // Predicated region
    $region2: #{churn_forward.1} parent=1 // pred_check
      _
    $region3: #{churn_forward.1} parent=1 // pred_check_branch
      %13 = sbr.rel (0) target = $region5
    $region4: #{churn_forward.1} parent=1 // pred_region
      _
    $region5: #{churn_forward.1} parent=1 // pred_fallthru
      _
    // Predicated region
    $region6: #{churn_forward.1} parent=1 // pred_check
      _
    $region7: #{churn_forward.1} parent=1 // pred_check_branch
      %15 = sbr.rel (0) target = $region9
    $region8: #{churn_forward.1} parent=1 // pred_region
      _
    $region9: #{churn_forward.1} parent=1 // pred_fallthru
      _
    // Predicated region
    $region10: #{churn_forward.1} parent=1 // pred_check
      _
    $region11: #{churn_forward.1} parent=1 // pred_check_branch
      %17 = sbr.rel (0) target = $region13
    $region12: #{churn_forward.1} parent=1 // pred_region
      _
    $region13: #{churn_forward.1} parent=1 // pred_fallthru
      _
    // Predicated region
    $region14: #{churn_forward.1} parent=1 // pred_check
      _
    $region15: #{churn_forward.1} parent=1 // pred_check_branch
      %19 = sbr.rel (0) target = $region17
    $region16: #{churn_forward.1} parent=1 // pred_region
      _
    $region17: #{churn_forward.1} parent=1 // pred_fallthru
      _
    // Predicated region
    $region18: #{churn_forward.1} parent=1 // pred_check
      _
    $region19: #{churn_forward.1} parent=1 // pred_check_branch
      %21 = sbr.rel (0) target = $region21
    $region20: #{churn_forward.1} parent=1 // pred_region
      _
    $region21: #{churn_forward.1} parent=1 // pred_fallthru
      _
    %v23 = vld [vmem:[%s1] sm:$0xf]
    %v24 = vld [vmem:[%s1 + $0x4] sm:$0xf]
    %v25 = vld [vmem:[%s1 + $0x8] sm:$0xf]
    %v26 = vld [vmem:[%s1 + $0xc] sm:$0xf]
    %v27 = vld [vmem:[%s1 + $0x10] sm:$0xf]
    %v28 = vld [vmem:[%s1 + $0x14] sm:$0xf]
    %v29 = vld [vmem:[%s1 + $0x18] sm:$0xf]
    %v30 = vld [vmem:[%s1 + $0x1c] sm:$0xf]
    %v31 = vld [vmem:[%s2] sm:$0xff]
    %v32 = vld [vmem:[%s2 + $0x8] sm:$0xff]
    %v33 = vld [vmem:[%s2 + $0x10] sm:$0xff]
    %v34 = vld [vmem:[%s2 + $0x18] sm:$0xff]
    %v35 = vld [vmem:[%s2 + $0x20] sm:$0xff]
    %v36 = vld [vmem:[%s2 + $0x28] sm:$0xff]
    %v37 = vld [vmem:[%s2 + $0x30] sm:$0xff]
    %v38 = vld [vmem:[%s2 + $0x38] sm:$0xff]
    %v39 = vld [vmem:[%s3] sm:$0xff]
    %v40 = vld [vmem:[%s3 + $0x8] sm:$0xff]
    %v41 = vld [vmem:[%s3 + $0x10] sm:$0xff]
    %v42 = vld [vmem:[%s3 + $0x18] sm:$0xff]
    %v43 = vld [vmem:[%s3 + $0x20] sm:$0xff]
    %v44 = vld [vmem:[%s3 + $0x28] sm:$0xff]
    %v45 = vld [vmem:[%s3 + $0x30] sm:$0xff]
    %v46 = vld [vmem:[%s3 + $0x38] sm:$0xff]
    %s47 = sld [smem:[#allocation2]]
    %v48 = vld [vmem:[%s0] sm:$0xff]
    %v49 = vld [vmem:[%s0 + $0x8] sm:$0xff]
    %v50 = vld [vmem:[%s0 + $0x10] sm:$0xff]
    %v51 = vld [vmem:[%s0 + $0x18] sm:$0xff]
    %v52 = vld [vmem:[%s0 + $0x20] sm:$0xff]
    %v53 = vld [vmem:[%s0 + $0x28] sm:$0xff]
    %v54 = vld [vmem:[%s0 + $0x30] sm:$0xff]
    %v55 = vld [vmem:[%s0 + $0x38] sm:$0xff]
    %v56 = vld [vmem:[%s0 + $0x40] sm:$0xff]
    %v57 = vld [vmem:[%s0 + $0x48] sm:$0xff]
    %v58 = vld [vmem:[%s0 + $0x50] sm:$0xff]
    %v59 = vld [vmem:[%s0 + $0x58] sm:$0xff]
    %v60 = vld [vmem:[%s0 + $0x60] sm:$0xff]
    %v61 = vld [vmem:[%s0 + $0x68] sm:$0xff]
    %v62 = vld [vmem:[%s0 + $0x70] sm:$0xff]
    %v63 = vld [vmem:[%s0 + $0x78] sm:$0xff]
    %v64 = vpack.c.bf16 %v49, %v48
    %v65 = vpack.c.bf16 %v51, %v50
    %v66 = vpack.c.bf16 %v53, %v52
    %v67 = vpack.c.bf16 %v55, %v54
    %v68 = vpack.c.bf16 %v57, %v56
    %v69 = vpack.c.bf16 %v59, %v58
    %v70 = vpack.c.bf16 %v61, %v60
    %v71 = vpack.c.bf16 %v63, %v62
    %73 = vset.pattern.permute.xlu0 0
    %74 = vperm.xlu0 %73, %v31
    %v75 = vpop.permute.xlu0 %74
    %78 = vset.pattern.permute.xlu0 0
    %79 = vperm.xlu0 %78, %v32
    %v80 = vpop.permute.xlu0 %79
    %83 = vset.pattern.permute.xlu0 0
    %84 = vperm.xlu0 %83, %v33
    %v85 = vpop.permute.xlu0 %84
    %88 = vset.pattern.permute.xlu0 0
    %89 = vperm.xlu0 %88, %v34
    %v90 = vpop.permute.xlu0 %89
    %93 = vset.pattern.permute.xlu0 0
    %94 = vperm.xlu0 %93, %v35
    %v95 = vpop.permute.xlu0 %94
    %98 = vset.pattern.permute.xlu0 0
    %99 = vperm.xlu0 %98, %v36
    %v100 = vpop.permute.xlu0 %99
    %103 = vset.pattern.permute.xlu0 0
    %104 = vperm.xlu0 %103, %v37
    %v105 = vpop.permute.xlu0 %104
    %108 = vset.pattern.permute.xlu0 0
    %109 = vperm.xlu0 %108, %v38
    %v110 = vpop.permute.xlu0 %109
    %v120 = vunpack.c.l.b16 %v23
    %v121 = vunpack.c.l.b16 %v24
    %v122 = vunpack.c.l.b16 %v25
    %v123 = vunpack.c.l.b16 %v26
    %v124 = vunpack.c.l.b16 %v27
    %v125 = vunpack.c.l.b16 %v28
    %v126 = vunpack.c.l.b16 %v29
    %v127 = vunpack.c.l.b16 %v30
    %v128 = vpack.c.b16 %v121, %v120
    %v129 = vpack.c.b16 %v123, %v122
    %v130 = vpack.c.b16 %v125, %v124
    %v131 = vpack.c.b16 %v127, %v126
    %vm132 = vcmask 130048
    %v134 = vsel %vm132, %v128, 0
    %v137 = vsel %vm132, %v129, 0
    %v140 = vsel %vm132, %v130, 0
    %v143 = vsel %vm132, %v131, 0
    %v146 = vsel %vm132, %v64, 0
    %v149 = vsel %vm132, %v65, 0
    %v152 = vsel %vm132, %v66, 0
    %v155 = vsel %vm132, %v67, 0
    %v158 = vsel %vm132, %v68, 0
    %v161 = vsel %vm132, %v69, 0
    %v164 = vsel %vm132, %v70, 0
    %v167 = vsel %vm132, %v71, 0
    %169 = vmatprep.subr.bf16.mxu0 0
    %170 = vmatpush1.bf16.xpose.msra.mxu0 %v146
    %171 = vmatprep.subr.bf16.mxu0 0
    %172 = vmatpush1.bf16.xpose.msra.mxu0 %v149
    %173 = vmatprep.subr.bf16.mxu0 0
    %174 = vmatpush1.bf16.xpose.msra.mxu0 %v152
    %175 = vmatprep.subr.bf16.mxu0 0
    %176 = vmatpush1.bf16.xpose.msra.mxu0 %v155
    %177 = vmatprep.subr.bf16.mxu0 0
    %178 = vmatpush1.bf16.xpose.msra.mxu0 %v158
    %179 = vmatprep.subr.bf16.mxu0 0
    %180 = vmatpush1.bf16.xpose.msra.mxu0 %v161
    %181 = vmatprep.subr.bf16.mxu0 0
    %182 = vmatpush1.bf16.xpose.msra.mxu0 %v164
    %183 = vmatprep.subr.bf16.mxu0 0
    %184 = vmatpush1.bf16.xpose.msra.mxu0 %v167
    %185 = vmatprep.subr.bf16.mxu0 0
    %186 = vmatpush1.bf16.xpose.msra.mxu0 0
    %187 = vmatprep.subr.bf16.mxu0 0
    %188 = vmatpush1.bf16.xpose.msra.mxu0 0
    %189 = vmatprep.subr.bf16.mxu0 0
    %190 = vmatpush1.bf16.xpose.msra.mxu0 0
    %191 = vmatprep.subr.bf16.mxu0 0
    %192 = vmatpush1.bf16.xpose.msra.mxu0 0
    %193 = vmatprep.subr.bf16.mxu0 0
    %194 = vmatpush1.bf16.xpose.msra.mxu0 0
    %195 = vmatprep.subr.bf16.mxu0 0
    %196 = vmatpush1.bf16.xpose.msra.mxu0 0
    %197 = vmatprep.subr.bf16.mxu0 0
    %198 = vmatpush1.bf16.xpose.msra.mxu0 0
    %199 = vmatprep.subr.bf16.mxu0 0
    %200 = vmatpush1.bf16.xpose.msra.mxu0 0
    %201 = vmatprep.mubr.bf16.mxu0 0
    %202 = vmatmul.mubr.bf16.gmra.mrb[0].mxu0 %v134
    %v203 = vpop.f32.mrb[0].mxu0
    %v204 = vadd.f32 %v75, %v203
    %v205 = vpop.f32.mrb[0].mxu0
    %v206 = vpop.f32.mrb[0].mxu0
    %v207 = vadd.f32 %v80, %v206
    %v208 = vpop.f32.mrb[0].mxu0
    %209 = vmatprep.mubr.bf16.mxu0 0
    %210 = vmatmul.mubr.bf16.gmra.mrb[0].mxu0 %v137
    %v211 = vpop.f32.mrb[0].mxu0
    %v212 = vadd.f32 %v85, %v211
    %v213 = vpop.f32.mrb[0].mxu0
    %v214 = vpop.f32.mrb[0].mxu0
    %v215 = vadd.f32 %v90, %v214
    %v216 = vpop.f32.mrb[0].mxu0
    %217 = vmatprep.mubr.bf16.mxu0 0
    %218 = vmatmul.mubr.bf16.gmra.mrb[0].mxu0 %v140
    %v219 = vpop.f32.mrb[0].mxu0
    %v220 = vadd.f32 %v95, %v219
    %v221 = vpop.f32.mrb[0].mxu0
    %v222 = vpop.f32.mrb[0].mxu0
    %v223 = vadd.f32 %v100, %v222
    %v224 = vpop.f32.mrb[0].mxu0
    %225 = vmatprep.mubr.bf16.mxu0 0
    %226 = vmatmul.mubr.bf16.gmra.mrb[0].mxu0 %v143
    %v227 = vpop.f32.mrb[0].mxu0
    %v228 = vadd.f32 %v105, %v227
    %v229 = vpop.f32.mrb[0].mxu0
    %v230 = vpop.f32.mrb[0].mxu0
    %v231 = vadd.f32 %v110, %v230
    %v232 = vpop.f32.mrb[0].mxu0
    %233 = vdwg.mxu0
    %v234 = vmax.f32 %v204, 0.0
    %v235 = vmax.f32 %v207, 0.0
    %v236 = vmax.f32 %v212, 0.0
    %v237 = vmax.f32 %v215, 0.0
    %v238 = vmax.f32 %v220, 0.0
    %v239 = vmax.f32 %v223, 0.0
    %v240 = vmax.f32 %v228, 0.0
    %v241 = vmax.f32 %v231, 0.0
    %243 = vset.pattern.permute.xlu0 0
    %244 = vperm.xlu0 %243, %v39
    %v245 = vpop.permute.xlu0 %244
    %248 = vset.pattern.permute.xlu0 0
    %249 = vperm.xlu0 %248, %v40
    %v250 = vpop.permute.xlu0 %249
    %253 = vset.pattern.permute.xlu0 0
    %254 = vperm.xlu0 %253, %v41
    %v255 = vpop.permute.xlu0 %254
    %258 = vset.pattern.permute.xlu0 0
    %259 = vperm.xlu0 %258, %v42
    %v260 = vpop.permute.xlu0 %259
    %263 = vset.pattern.permute.xlu0 0
    %264 = vperm.xlu0 %263, %v43
    %v265 = vpop.permute.xlu0 %264
    %268 = vset.pattern.permute.xlu0 0
    %269 = vperm.xlu0 %268, %v44
    %v270 = vpop.permute.xlu0 %269
    %273 = vset.pattern.permute.xlu0 0
    %274 = vperm.xlu0 %273, %v45
    %v275 = vpop.permute.xlu0 %274
    %278 = vset.pattern.permute.xlu0 0
    %279 = vperm.xlu0 %278, %v46
    %v280 = vpop.permute.xlu0 %279
    %v282 = vmul.f32 %v234, %v245
    %v283 = vmul.f32 %v235, %v250
    %v284 = vmul.f32 %v236, %v255
    %v285 = vmul.f32 %v237, %v260
    %v286 = vmul.f32 %v238, %v265
    %v287 = vmul.f32 %v239, %v270
    %v288 = vmul.f32 %v240, %v275
    %v289 = vmul.f32 %v241, %v280
    %v290 = vadd.f32 %v282, %v283
    %v291 = vadd.f32 %v290, %v284
    %v292 = vadd.f32 %v291, %v285
    %v293 = vadd.f32 %v292, %v286
    %v294 = vadd.f32 %v293, %v287
    %v295 = vadd.f32 %v294, %v288
    %v296 = vadd.f32 %v295, %v289
    %v297 = vrot.slane %v296, 4
    %v298 = vadd.f32 %v296, %v297
    %v299 = vrot.slane %v298, 2
    %v300 = vadd.f32 %v298, %v299
    %v301 = vrot.slane %v300, 1
    %v302 = vadd.f32 %v300, %v301
    %v303 = vstv %s47
    %v304 = vadd.f32 %v302, %v303
    %v305 = vmul.f32 %v304, 0.5
    %v306 = vtanh.pop %v305
    %v307 = vmul.f32 %v306, 0.5
    %v308 = vadd.f32 %v307, 0.5
    %309 = vst [vmem:[#allocation3] sm:$0x1] %v308
    // Predicated region
    $region22: #{churn_forward.1} parent=1 // pred_check
      _
    $region23: #{churn_forward.1} parent=1 // pred_check_branch
      %311 = sbr.rel (0) target = $region25
    $region24: #{churn_forward.1} parent=1 // pred_region
      %s313 = ssub.s32 16, 16
      %314 = vsyncadd [#allocation4], %s313
      %s316 = sshll.u32 [#allocation3], 4
      %s317 = int_to_ptr.vmem [resolvable:$true] %s316
      %319 = dma.vmem_to_hbm [thread:$0]  %s317, 16, %s5, [#allocation4]
    $region25: #{churn_forward.1} parent=1 // pred_fallthru
      _
    // Predicated region
    $region26: #{churn_forward.1} parent=1 // pred_check
      _
    $region27: #{churn_forward.1} parent=1 // pred_check_branch
      %321 = sbr.rel (0) target = $region29
    $region28: #{churn_forward.1} parent=1 // pred_region
      %322 = dma.done [#allocation4], 16
    $region29: #{churn_forward.1} parent=1 // pred_fallthru
      _
    %323 = vsyncpa [#allocation4], 1

</llo_original>
